<compile_context>
chip_gen: v5e
topology: v5e:2x2
jax: 0.10.0
libtpu: 0.0.40
codegen_flags: <defaults>
</compile_context>

<pallas_src>
import jax
import jax.numpy as jnp
from jax.experimental import pallas as pl
from jax.experimental.pallas import tpu as pltpu

INPUT_DIM = 17     # 14 joint positions + 3 object position
ACTION_DIM = 14
HIDDEN = 128
HEAD_PAD = 128     # actor(14) + critic(1) packed + zero-padded to 128 lanes
MAX_TB = 2048      # max batch rows per grid step (multiple of 8, VMEM-safe)


def actor_critic_kernel(x_ref, w1_ref, b1_ref, w2_ref, b2_ref,
                        wh_ref, bh_ref, out_ref):
    # x_ref : (TB, 17)  f32   raw observations (no wrapper pad/cast pass)
    # w1    : (17, 128) f32   fc1 weight (f32 operands: K=17 is tiny, keeps fidelity)
    # w2,wh : (128,128) bf16  fc2 / fused-head weights (MXU bf16, f32 accumulation)
    # b*    : (1, 128)  f32   biases (elementwise stays f32 -> works on v5e VPU)
    # out   : (TB, 128) bf16  lane-dense fused actor|critic slab (halved writeback)
    x = x_ref[...]

    # fc1 + relu (f32 operands, f32 accumulation)
    h1 = jnp.dot(x, w1_ref[...], preferred_element_type=jnp.float32)
    h1 = jnp.maximum(h1 + b1_ref[...], 0.0)                       # (TB, 128) f32

    # fc2 + relu (bf16 MXU operands, f32 accumulation, f32 elementwise)
    h2 = jnp.dot(h1.astype(jnp.bfloat16), w2_ref[...],
                 preferred_element_type=jnp.float32)
    h2 = jnp.maximum(h2 + b2_ref[...], 0.0)                       # (TB, 128) f32

    # fused actor+critic head: one matmul, one unmasked lane-dense bf16 store
    out = jnp.dot(h2.astype(jnp.bfloat16), wh_ref[...],
                  preferred_element_type=jnp.float32)
    out_ref[...] = (out + bh_ref[...]).astype(jnp.bfloat16)       # (TB, 128) bf16


def _tile_and_pad(batch):
    """Pick (tile_rows, padded_batch). Tile is a multiple of 8, capped at MAX_TB."""
    b8 = ((batch + 7) // 8) * 8
    if b8 <= MAX_TB:
        return b8, b8                           # single grid step
    n_steps = -(-b8 // MAX_TB)                  # >= 2 steps -> megacore sharding
    tb = ((-(-b8 // n_steps) + 7) // 8) * 8
    return tb, n_steps * tb


def actor_critic_forward(x, packed):
    """x: (B, INPUT_DIM) float32. Returns (action_mean (B, 14), value (B, 1))."""
    B = x.shape[0]
    w1, b1, w2, b2, wh, bh = packed

    tb, b_pad = _tile_and_pad(B)
    if b_pad != B:
        x = jnp.pad(x, ((0, b_pad - B), (0, 0)))   # batch-only zero pad

    out = pl.pallas_call(
        actor_critic_kernel,
        out_shape=jax.ShapeDtypeStruct((b_pad, HEAD_PAD), jnp.bfloat16),
        grid_spec=pltpu.PrefetchScalarGridSpec(
            num_scalar_prefetch=0,
            grid=(b_pad // tb,),
            in_specs=[
                pl.BlockSpec((tb, INPUT_DIM), lambda i: (i, 0)),     # x tile (f32)
                pl.BlockSpec((INPUT_DIM, HIDDEN), lambda i: (0, 0)),  # W1 (resident)
                pl.BlockSpec((1, HIDDEN), lambda i: (0, 0)),          # b1
                pl.BlockSpec((HIDDEN, HIDDEN), lambda i: (0, 0)),     # W2
                pl.BlockSpec((1, HIDDEN), lambda i: (0, 0)),          # b2
                pl.BlockSpec((HIDDEN, HEAD_PAD), lambda i: (0, 0)),   # fused head W
                pl.BlockSpec((1, HEAD_PAD), lambda i: (0, 0)),        # fused head b
            ],
            out_specs=pl.BlockSpec((tb, HEAD_PAD), lambda i: (i, 0)),
        ),
        compiler_params=pltpu.CompilerParams(
            dimension_semantics=("parallel",),   # shard batch across TCs on v7x
        ),
    )(x, w1, b1, w2, b2, wh, bh)

    # One narrow slice of the packed slab (cols 0..13 actor, 14 critic),
    # then split the (B, 15) payload -- avoids a second pass over the 128-wide slab.
    payload = out[:B, :ACTION_DIM + 1].astype(jnp.float32)
    return payload[:, :ACTION_DIM], payload[:, ACTION_DIM:ACTION_DIM + 1]


def init_params(key):
    """Deterministic synthetic parameters (Kaiming-uniform-ish like nn.Linear).

    Stored as (in_features, out_features), i.e. transposed vs torch.
    """
    ks = jax.random.split(key, 8)

    def linear(kw, kb, fan_in, fan_out):
        bound = 1.0 / jnp.sqrt(jnp.float32(fan_in))
        w = jax.random.uniform(kw, (fan_in, fan_out), jnp.float32, -bound, bound)
        b = jax.random.uniform(kb, (1, fan_out), jnp.float32, -bound, bound)
        return w, b

    w1, b1 = linear(ks[0], ks[1], INPUT_DIM, HIDDEN)
    w2, b2 = linear(ks[2], ks[3], HIDDEN, HIDDEN)
    wa, ba = linear(ks[4], ks[5], HIDDEN, ACTION_DIM)
    wc, bc = linear(ks[6], ks[7], HIDDEN, 1)
    return (w1, b1, w2, b2, wa, ba, wc, bc)


def pack_params(params):
    """One-time packing: fuse actor+critic head (128 lanes), cast fc2/head bf16."""
    w1, b1, w2, b2, wa, ba, wc, bc = params

    wh = jnp.zeros((HIDDEN, HEAD_PAD), jnp.float32)
    wh = wh.at[:, :ACTION_DIM].set(wa)
    wh = wh.at[:, ACTION_DIM:ACTION_DIM + 1].set(wc)

    bh = jnp.zeros((1, HEAD_PAD), jnp.float32)
    bh = bh.at[:, :ACTION_DIM].set(ba)
    bh = bh.at[:, ACTION_DIM:ACTION_DIM + 1].set(bc)

    return (w1, b1, w2.astype(jnp.bfloat16), b2, wh.astype(jnp.bfloat16), bh)


def reference_forward_f32(x, params):
    """Exact torch-semantics f32 reference."""
    w1, b1, w2, b2, wa, ba, wc, bc = params
    h1 = jnp.maximum(x @ w1 + b1, 0.0)
    h2 = jnp.maximum(h1 @ w2 + b2, 0.0)
    return h2 @ wa + ba, h2 @ wc + bc


def reference_forward_mirror(x, packed):
    """Plain-jnp mirror of the kernel math (f32 fc1, bf16 fc2/head, bf16 store)."""
    w1, b1, w2, b2, wh, bh = packed
    h1 = jnp.maximum(
        jnp.dot(x, w1, preferred_element_type=jnp.float32) + b1, 0.0)
    h2 = jnp.maximum(
        jnp.dot(h1.astype(jnp.bfloat16), w2, preferred_element_type=jnp.float32) + b2, 0.0)
    out = (jnp.dot(h2.astype(jnp.bfloat16), wh, preferred_element_type=jnp.float32)
           + bh).astype(jnp.bfloat16).astype(jnp.float32)
    return out[:, :ACTION_DIM], out[:, ACTION_DIM:ACTION_DIM + 1]


if __name__ == "__main__":
    key = jax.random.PRNGKey(0)
    k_params, k_x = jax.random.split(key)

    params = init_params(k_params)
    packed = pack_params(params)

    # Small rollout batch; 203 is NOT a multiple of 8, which exercises the
    # batch-padding path (pad to 208 rows, single adaptive-tile grid step).
    B = 203
    x = jax.random.uniform(k_x, (B, INPUT_DIM), jnp.float32, -10.0, 10.0)

    fwd = jax.jit(actor_critic_forward)
    action_mean, value = fwd(x, packed)
    jax.block_until_ready((action_mean, value))

    assert action_mean.shape == (B, ACTION_DIM)
    assert value.shape == (B, 1)

    # Check vs a plain-jnp mirror of the kernel's mixed-precision math.
    ref_a_q, ref_v_q = reference_forward_mirror(x, packed)
    assert jnp.allclose(action_mean, ref_a_q, atol=1e-1, rtol=5e-2)
    assert jnp.allclose(value, ref_v_q, atol=1e-1, rtol=5e-2)

    # Semantic sanity check vs the exact f32 torch-style reference
    # (fc1 now runs on f32 operands, so this is much tighter than before).
    ref_a, ref_v = reference_forward_f32(x, params)
    assert jnp.allclose(action_mean, ref_a, atol=2.5e-1, rtol=5e-2)
    assert jnp.allclose(value, ref_v, atol=2.5e-1, rtol=5e-2)

    print("KERNEL_OK")
</pallas_src>

<mosaic_0001>
module attributes {stable_mosaic.version = 11 : i64} {
  func.func @actor_critic_kernel(%arg0: i32, %arg1: memref<208x17xf32, #tpu.memory_space<vmem>>, %arg2: memref<17x128xf32, #tpu.memory_space<vmem>>, %arg3: memref<1x128xf32, #tpu.memory_space<vmem>>, %arg4: memref<128x128xbf16, #tpu.memory_space<vmem>>, %arg5: memref<1x128xf32, #tpu.memory_space<vmem>>, %arg6: memref<128x128xbf16, #tpu.memory_space<vmem>>, %arg7: memref<1x128xf32, #tpu.memory_space<vmem>>, %arg8: memref<208x128xbf16, #tpu.memory_space<vmem>>) attributes {dimension_semantics = [#tpu.dimension_semantics<parallel>], iteration_bounds = array<i64: 1>, scalar_prefetch = 0 : i64, scratch_operands = 0 : i64, tpu.core_type = #tpu.core_type<tc>, window_params = [{transform_indices = @transform_0, window_bounds = array<i64: 208, 17>}, {pipeline_mode = #tpu.pipeline_mode<synchronous>, transform_indices = @transform_1, window_bounds = array<i64: 17, 128>}, {pipeline_mode = #tpu.pipeline_mode<synchronous>, transform_indices = @transform_2, window_bounds = array<i64: 1, 128>}, {pipeline_mode = #tpu.pipeline_mode<synchronous>, transform_indices = @transform_3, window_bounds = array<i64: 128, 128>}, {pipeline_mode = #tpu.pipeline_mode<synchronous>, transform_indices = @transform_4, window_bounds = array<i64: 1, 128>}, {pipeline_mode = #tpu.pipeline_mode<synchronous>, transform_indices = @transform_5, window_bounds = array<i64: 128, 128>}, {pipeline_mode = #tpu.pipeline_mode<synchronous>, transform_indices = @transform_6, window_bounds = array<i64: 1, 128>}, {transform_indices = @transform_7, window_bounds = array<i64: 208, 128>}]} {
    %c0 = arith.constant 0 : index
    %c0_0 = arith.constant 0 : index
    %0 = vector.load %arg1[%c0, %c0_0] : memref<208x17xf32, #tpu.memory_space<vmem>>, vector<208x17xf32>
    %c0_1 = arith.constant 0 : index
    %c0_2 = arith.constant 0 : index
    %1 = vector.load %arg2[%c0_1, %c0_2] : memref<17x128xf32, #tpu.memory_space<vmem>>, vector<17x128xf32>
    %cst = arith.constant dense<0.000000e+00> : vector<208x128xf32>
    %2 = tpu.matmul %0, %1, %cst {dimension_numbers = #tpu.dot_dimension_numbers<[1], [0], [0], [1], [0, 0, 1, 1], [], []>} : vector<208x17xf32>, vector<17x128xf32>, vector<208x128xf32> -> vector<208x128xf32>
    %c0_3 = arith.constant 0 : index
    %c0_4 = arith.constant 0 : index
    %3 = vector.load %arg3[%c0_3, %c0_4] : memref<1x128xf32, #tpu.memory_space<vmem>>, vector<1x128xf32>
    %4 = vector.broadcast %3 : vector<1x128xf32> to vector<208x128xf32>
    %5 = arith.addf %2, %4 : vector<208x128xf32>
    %cst_5 = arith.constant 0.000000e+00 : f32
    %6 = vector.broadcast %cst_5 : f32 to vector<208x128xf32>
    %7 = arith.maximumf %5, %6 : vector<208x128xf32>
    %8 = arith.truncf %7 : vector<208x128xf32> to vector<208x128xbf16>
    %c0_6 = arith.constant 0 : index
    %c0_7 = arith.constant 0 : index
    %9 = vector.load %arg4[%c0_6, %c0_7] : memref<128x128xbf16, #tpu.memory_space<vmem>>, vector<128x128xbf16>
    %cst_8 = arith.constant dense<0.000000e+00> : vector<208x128xf32>
    %10 = tpu.matmul %8, %9, %cst_8 {dimension_numbers = #tpu.dot_dimension_numbers<[1], [0], [0], [1], [0, 0, 1, 1], [], []>} : vector<208x128xbf16>, vector<128x128xbf16>, vector<208x128xf32> -> vector<208x128xf32>
    %c0_9 = arith.constant 0 : index
    %c0_10 = arith.constant 0 : index
    %11 = vector.load %arg5[%c0_9, %c0_10] : memref<1x128xf32, #tpu.memory_space<vmem>>, vector<1x128xf32>
    %12 = vector.broadcast %11 : vector<1x128xf32> to vector<208x128xf32>
    %13 = arith.addf %10, %12 : vector<208x128xf32>
    %cst_11 = arith.constant 0.000000e+00 : f32
    %14 = vector.broadcast %cst_11 : f32 to vector<208x128xf32>
    %15 = arith.maximumf %13, %14 : vector<208x128xf32>
    %16 = arith.truncf %15 : vector<208x128xf32> to vector<208x128xbf16>
    %c0_12 = arith.constant 0 : index
    %c0_13 = arith.constant 0 : index
    %17 = vector.load %arg6[%c0_12, %c0_13] : memref<128x128xbf16, #tpu.memory_space<vmem>>, vector<128x128xbf16>
    %cst_14 = arith.constant dense<0.000000e+00> : vector<208x128xf32>
    %18 = tpu.matmul %16, %17, %cst_14 {dimension_numbers = #tpu.dot_dimension_numbers<[1], [0], [0], [1], [0, 0, 1, 1], [], []>} : vector<208x128xbf16>, vector<128x128xbf16>, vector<208x128xf32> -> vector<208x128xf32>
    %c0_15 = arith.constant 0 : index
    %c0_16 = arith.constant 0 : index
    %19 = vector.load %arg7[%c0_15, %c0_16] : memref<1x128xf32, #tpu.memory_space<vmem>>, vector<1x128xf32>
    %20 = vector.broadcast %19 : vector<1x128xf32> to vector<208x128xf32>
    %21 = arith.addf %18, %20 : vector<208x128xf32>
    %22 = arith.truncf %21 : vector<208x128xf32> to vector<208x128xbf16>
    %c0_17 = arith.constant 0 : index
    %c0_18 = arith.constant 0 : index
    %23 = vector.load %arg8[%c0_17, %c0_18] : memref<208x128xbf16, #tpu.memory_space<vmem>>, vector<208x128xbf16>
    tpu.vector_store %arg8[%c0_17, %c0_18], %22 {strides = array<i32>} : memref<208x128xbf16, #tpu.memory_space<vmem>>, vector<208x128xbf16>,
    return
  }
  func.func @transform_0(%arg0: i32) -> (i32, i32) {
    %c0_i32 = arith.constant 0 : i32
    %c0_i32_0 = arith.constant 0 : i32
    return %arg0, %c0_i32 : i32, i32
  }
  func.func @transform_1(%arg0: i32) -> (i32, i32) {
    %c0_i32 = arith.constant 0 : i32
    %c0_i32_0 = arith.constant 0 : i32
    %c0_i32_1 = arith.constant 0 : i32
    return %c0_i32, %c0_i32_0 : i32, i32
  }
  func.func @transform_2(%arg0: i32) -> (i32, i32) {
    %c0_i32 = arith.constant 0 : i32
    %c0_i32_0 = arith.constant 0 : i32
    %c0_i32_1 = arith.constant 0 : i32
    return %c0_i32, %c0_i32_0 : i32, i32
  }
  func.func @transform_3(%arg0: i32) -> (i32, i32) {
    %c0_i32 = arith.constant 0 : i32
    %c0_i32_0 = arith.constant 0 : i32
    %c0_i32_1 = arith.constant 0 : i32
    return %c0_i32, %c0_i32_0 : i32, i32
  }
  func.func @transform_4(%arg0: i32) -> (i32, i32) {
    %c0_i32 = arith.constant 0 : i32
    %c0_i32_0 = arith.constant 0 : i32
    %c0_i32_1 = arith.constant 0 : i32
    return %c0_i32, %c0_i32_0 : i32, i32
  }
  func.func @transform_5(%arg0: i32) -> (i32, i32) {
    %c0_i32 = arith.constant 0 : i32
    %c0_i32_0 = arith.constant 0 : i32
    %c0_i32_1 = arith.constant 0 : i32
    return %c0_i32, %c0_i32_0 : i32, i32
  }
  func.func @transform_6(%arg0: i32) -> (i32, i32) {
    %c0_i32 = arith.constant 0 : i32
    %c0_i32_0 = arith.constant 0 : i32
    %c0_i32_1 = arith.constant 0 : i32
    return %c0_i32, %c0_i32_0 : i32, i32
  }
  func.func @transform_7(%arg0: i32) -> (i32, i32) {
    %c0_i32 = arith.constant 0 : i32
    %c0_i32_0 = arith.constant 0 : i32
    return %arg0, %c0_i32 : i32, i32
  }
}

</mosaic_0001>

<llo_original>
// kernel: actor_critic_forward.1
$region0: #{actor_critic_forward.1}
  #allocation0 [shape = 'u32[]', space=smem, size = 0x4, offset = 0x4, fixed_abs, tag = 'smem constant byte address 0x4 - core index']
  #allocation1 [shape = 'u32[72,128]{1,0:T(1,128)}', space=vmem, size = 0x9000, scoped, tag = 'internal scratch']
  %s0 = inlined_call_operand.vmem [shape: f32[208,17], index: 0, kind: input, shape index: {}]
  %s1 = inlined_call_operand.vmem [shape: f32[17,128], index: 1, kind: input, shape index: {}]
  %s2 = inlined_call_operand.vmem [shape: f32[1,128], index: 2, kind: input, shape index: {}]
  %s3 = inlined_call_operand.vmem [shape: bf16[128,128], index: 3, kind: input, shape index: {}]
  %s4 = inlined_call_operand.vmem [shape: f32[1,128], index: 4, kind: input, shape index: {}]
  %s5 = inlined_call_operand.vmem [shape: bf16[128,128], index: 5, kind: input, shape index: {}]
  %s6 = inlined_call_operand.vmem [shape: f32[1,128], index: 6, kind: input, shape index: {}]
  %s7 = inlined_call_operand.vmem [shape: bf16[208,128], index: 7, kind: output, shape index: {}]
  %s8 = sld [smem:[#allocation0]]
  $region38: #{actor_critic_forward.1} parent=0
    _
  %s10 = ssub.s32 1, %s8
  %s11 = scalar_select 0, %s10, %s8
  // Predicated region
  $region2: #{actor_critic_forward.1} parent=0 // pred_check
    _
  $region3: #{actor_critic_forward.1} parent=0 // pred_check_branch
    %13 = sbr.rel (0) target = $region5
  $region4: #{actor_critic_forward.1} parent=0 // pred_region
    _
  $region5: #{actor_critic_forward.1} parent=0 // pred_fallthru
    _
  // Predicated region
  $region6: #{actor_critic_forward.1} parent=0 // pred_check
    _
  $region7: #{actor_critic_forward.1} parent=0 // pred_check_branch
    %15 = sbr.rel (0) target = $region9
  $region8: #{actor_critic_forward.1} parent=0 // pred_region
    _
  $region9: #{actor_critic_forward.1} parent=0 // pred_fallthru
    _
  // Predicated region
  $region10: #{actor_critic_forward.1} parent=0 // pred_check
    _
  $region11: #{actor_critic_forward.1} parent=0 // pred_check_branch
    %17 = sbr.rel (0) target = $region13
  $region12: #{actor_critic_forward.1} parent=0 // pred_region
    _
  $region13: #{actor_critic_forward.1} parent=0 // pred_fallthru
    _
  // Predicated region
  $region14: #{actor_critic_forward.1} parent=0 // pred_check
    _
  $region15: #{actor_critic_forward.1} parent=0 // pred_check_branch
    %19 = sbr.rel (0) target = $region17
  $region16: #{actor_critic_forward.1} parent=0 // pred_region
    _
  $region17: #{actor_critic_forward.1} parent=0 // pred_fallthru
    _
  // Predicated region
  $region18: #{actor_critic_forward.1} parent=0 // pred_check
    _
  $region19: #{actor_critic_forward.1} parent=0 // pred_check_branch
    %21 = sbr.rel (0) target = $region21
  $region20: #{actor_critic_forward.1} parent=0 // pred_region
    _
  $region21: #{actor_critic_forward.1} parent=0 // pred_fallthru
    _
  // Predicated region
  $region22: #{actor_critic_forward.1} parent=0 // pred_check
    _
  $region23: #{actor_critic_forward.1} parent=0 // pred_check_branch
    %23 = sbr.rel (0) target = $region25
  $region24: #{actor_critic_forward.1} parent=0 // pred_region
    _
  $region25: #{actor_critic_forward.1} parent=0 // pred_fallthru
    _
  // Predicated region
  $region26: #{actor_critic_forward.1} parent=0 // pred_check
    _
  $region27: #{actor_critic_forward.1} parent=0 // pred_check_branch
    %25 = sbr.rel (0) target = $region29
  $region28: #{actor_critic_forward.1} parent=0 // pred_region
    _
  $region29: #{actor_critic_forward.1} parent=0 // pred_fallthru
    _
  %v26 = vld [vmem:[%s0] sm:$0xff]
  %v27 = vld [vmem:[%s0 + $0x8] sm:$0xff]
  %v28 = vld [vmem:[%s0 + $0x10] sm:$0xff]
  %v29 = vld [vmem:[%s0 + $0x18] sm:$0xff]
  %v30 = vld [vmem:[%s0 + $0x20] sm:$0xff]
  %v31 = vld [vmem:[%s0 + $0x28] sm:$0xff]
  %v32 = vld [vmem:[%s0 + $0x30] sm:$0xff]
  %v33 = vld [vmem:[%s0 + $0x38] sm:$0xff]
  %v34 = vld [vmem:[%s0 + $0x40] sm:$0xff]
  %v35 = vld [vmem:[%s0 + $0x48] sm:$0xff]
  %v36 = vld [vmem:[%s0 + $0x50] sm:$0xff]
  %v37 = vld [vmem:[%s0 + $0x58] sm:$0xff]
  %v38 = vld [vmem:[%s0 + $0x60] sm:$0xff]
  %v39 = vld [vmem:[%s0 + $0x68] sm:$0xff]
  %v40 = vld [vmem:[%s0 + $0x70] sm:$0xff]
  %v41 = vld [vmem:[%s0 + $0x78] sm:$0xff]
  %v42 = vld [vmem:[%s0 + $0x80] sm:$0xff]
  %v43 = vld [vmem:[%s0 + $0x88] sm:$0xff]
  %v44 = vld [vmem:[%s0 + $0x90] sm:$0xff]
  %v45 = vld [vmem:[%s0 + $0x98] sm:$0xff]
  %v46 = vld [vmem:[%s0 + $0xa0] sm:$0xff]
  %v47 = vld [vmem:[%s0 + $0xa8] sm:$0xff]
  %v48 = vld [vmem:[%s0 + $0xb0] sm:$0xff]
  %v49 = vld [vmem:[%s0 + $0xb8] sm:$0xff]
  %v50 = vld [vmem:[%s0 + $0xc0] sm:$0xff]
  %v51 = vld [vmem:[%s0 + $0xc8] sm:$0xff]
  %v52 = vld [vmem:[%s1] sm:$0xff]
  %v53 = vld [vmem:[%s1 + $0x8] sm:$0xff]
  %v54 = vld [vmem:[%s1 + $0x10] sm:$0x1]
  %v55 = vld [vmem:[%s2] sm:$0x1]
  %v57 = vperm.slane %v55, 0
  %vm59 = vcmask 138240
  %v61 = vsel %vm59, %v26, 0
  %v64 = vsel %vm59, %v27, 0
  %v67 = vsel %vm59, %v28, 0
  %v70 = vsel %vm59, %v29, 0
  %v73 = vsel %vm59, %v30, 0
  %v76 = vsel %vm59, %v31, 0
  %v79 = vsel %vm59, %v32, 0
  %v82 = vsel %vm59, %v33, 0
  %v85 = vsel %vm59, %v34, 0
  %v88 = vsel %vm59, %v35, 0
  %v91 = vsel %vm59, %v36, 0
  %v94 = vsel %vm59, %v37, 0
  %v97 = vsel %vm59, %v38, 0
  %v100 = vsel %vm59, %v39, 0
  %v103 = vsel %vm59, %v40, 0
  %v106 = vsel %vm59, %v41, 0
  %v109 = vsel %vm59, %v42, 0
  %v112 = vsel %vm59, %v43, 0
  %v115 = vsel %vm59, %v44, 0
  %v118 = vsel %vm59, %v45, 0
  %v121 = vsel %vm59, %v46, 0
  %v124 = vsel %vm59, %v47, 0
  %v127 = vsel %vm59, %v48, 0
  %v130 = vsel %vm59, %v49, 0
  %v133 = vsel %vm59, %v50, 0
  %v136 = vsel %vm59, %v51, 0
  %vm138 = vcmask 1040384
  %v140 = vsel %vm138, %v54, 0
  %142 = vmatpush.msra.mxu0 0.0
  %143 = vmatpush.msra.mxu0 0.0
  %144 = vmatpush.msra.mxu0 0.0
  %145 = vmatpush.msra.mxu0 0.0
  %146 = vmatpush.msra.mxu0 0.0
  %147 = vmatpush.msra.mxu0 0.0
  %148 = vmatpush.msra.mxu0 0.0
  %149 = vmatpush.msra.mxu0 0.0
  %150 = vmatpush.msra.mxu0 0.0
  %151 = vmatpush.msra.mxu0 0.0
  %152 = vmatpush.msra.mxu0 0.0
  %153 = vmatpush.msra.mxu0 0.0
  %154 = vmatpush.msra.mxu0 0.0
  %155 = vmatpush.msra.mxu0 %v140
  %156 = vmatpush.msra.mxu0 %v53
  %157 = vmatpush.msra.mxu0 %v52
  %158 = vmatmul.f32.gmra.mxu0 %v61
  %v159 = vpop.f32.mrf.mxu0
  %v160 = vadd.f32 %v57, %v159
  %161 = vmatmul.f32.gmra.mxu0 %v64
  %v162 = vpop.f32.mrf.mxu0
  %v163 = vadd.f32 %v57, %v162
  %164 = vmatmul.f32.gmra.mxu0 %v67
  %v165 = vpop.f32.mrf.mxu0
  %v166 = vadd.f32 %v57, %v165
  %167 = vmatmul.f32.gmra.mxu0 %v70
  %v168 = vpop.f32.mrf.mxu0
  %v169 = vadd.f32 %v57, %v168
  %170 = vmatmul.f32.gmra.mxu0 %v73
  %v171 = vpop.f32.mrf.mxu0
  %v172 = vadd.f32 %v57, %v171
  %173 = vmatmul.f32.gmra.mxu0 %v76
  %v174 = vpop.f32.mrf.mxu0
  %v175 = vadd.f32 %v57, %v174
  %176 = vmatmul.f32.gmra.mxu0 %v79
  %v177 = vpop.f32.mrf.mxu0
  %v178 = vadd.f32 %v57, %v177
  %179 = vmatmul.f32.gmra.mxu0 %v82
  %v180 = vpop.f32.mrf.mxu0
  %v181 = vadd.f32 %v57, %v180
  %182 = vmatmul.f32.gmra.mxu0 %v85
  %v183 = vpop.f32.mrf.mxu0
  %v184 = vadd.f32 %v57, %v183
  %185 = vmatmul.f32.gmra.mxu0 %v88
  %v186 = vpop.f32.mrf.mxu0
  %v187 = vadd.f32 %v57, %v186
  %188 = vmatmul.f32.gmra.mxu0 %v91
  %v189 = vpop.f32.mrf.mxu0
  %v190 = vadd.f32 %v57, %v189
  %191 = vmatmul.f32.gmra.mxu0 %v94
  %v192 = vpop.f32.mrf.mxu0
  %v193 = vadd.f32 %v57, %v192
  %194 = vmatmul.f32.gmra.mxu0 %v97
  %v195 = vpop.f32.mrf.mxu0
  %v196 = vadd.f32 %v57, %v195
  %197 = vmatmul.f32.gmra.mxu0 %v100
  %v198 = vpop.f32.mrf.mxu0
  %v199 = vadd.f32 %v57, %v198
  %200 = vmatmul.f32.gmra.mxu0 %v103
  %v201 = vpop.f32.mrf.mxu0
  %v202 = vadd.f32 %v57, %v201
  %203 = vmatmul.f32.gmra.mxu0 %v106
  %v204 = vpop.f32.mrf.mxu0
  %v205 = vadd.f32 %v57, %v204
  %206 = vmatmul.f32.gmra.mxu0 %v109
  %v207 = vpop.f32.mrf.mxu0
  %v208 = vadd.f32 %v57, %v207
  %209 = vmatmul.f32.gmra.mxu0 %v112
  %v210 = vpop.f32.mrf.mxu0
  %v211 = vadd.f32 %v57, %v210
  %212 = vmatmul.f32.gmra.mxu0 %v115
  %v213 = vpop.f32.mrf.mxu0
  %v214 = vadd.f32 %v57, %v213
  %215 = vmatmul.f32.gmra.mxu0 %v118
  %v216 = vpop.f32.mrf.mxu0
  %v217 = vadd.f32 %v57, %v216
  %218 = vmatmul.f32.gmra.mxu0 %v121
  %v219 = vpop.f32.mrf.mxu0
  %v220 = vadd.f32 %v57, %v219
  %221 = vmatmul.f32.gmra.mxu0 %v124
  %v222 = vpop.f32.mrf.mxu0
  %v223 = vadd.f32 %v57, %v222
  %224 = vmatmul.f32.gmra.mxu0 %v127
  %v225 = vpop.f32.mrf.mxu0
  %v226 = vadd.f32 %v57, %v225
  %227 = vmatmul.f32.gmra.mxu0 %v130
  %v228 = vpop.f32.mrf.mxu0
  %v229 = vadd.f32 %v57, %v228
  %230 = vmatmul.f32.gmra.mxu0 %v133
  %v231 = vpop.f32.mrf.mxu0
  %v232 = vadd.f32 %v57, %v231
  %233 = vmatmul.f32.gmra.mxu0 %v136
  %v234 = vpop.f32.mrf.mxu0
  %v235 = vadd.f32 %v57, %v234
  %236 = vdwg.mxu0
  %v237 = vmax.f32 %v160, 0.0
  %v238 = vmax.f32 %v163, 0.0
  %v239 = vmax.f32 %v166, 0.0
  %v240 = vmax.f32 %v169, 0.0
  %v241 = vmax.f32 %v172, 0.0
  %v242 = vmax.f32 %v175, 0.0
  %v243 = vmax.f32 %v178, 0.0
  %v244 = vmax.f32 %v181, 0.0
  %v245 = vmax.f32 %v184, 0.0
  %v246 = vmax.f32 %v187, 0.0
  %v247 = vmax.f32 %v190, 0.0
  %v248 = vmax.f32 %v193, 0.0
  %v249 = vmax.f32 %v196, 0.0
  %v250 = vmax.f32 %v199, 0.0
  %v251 = vmax.f32 %v202, 0.0
  %v252 = vmax.f32 %v205, 0.0
  %v253 = vmax.f32 %v208, 0.0
  %v254 = vmax.f32 %v211, 0.0
  %v255 = vmax.f32 %v214, 0.0
  %v256 = vmax.f32 %v217, 0.0
  %v257 = vmax.f32 %v220, 0.0
  %v258 = vmax.f32 %v223, 0.0
  %v259 = vmax.f32 %v226, 0.0
  %v260 = vmax.f32 %v229, 0.0
  %v261 = vmax.f32 %v232, 0.0
  %v262 = vmax.f32 %v235, 0.0
  %v263 = vpack.c.bf16 %v238, %v237
  %v264 = vpack.c.bf16 %v240, %v239
  %v265 = vpack.c.bf16 %v242, %v241
  %v266 = vpack.c.bf16 %v244, %v243
  %v267 = vpack.c.bf16 %v246, %v245
  %v268 = vpack.c.bf16 %v248, %v247
  %v269 = vpack.c.bf16 %v250, %v249
  %v270 = vpack.c.bf16 %v252, %v251
  %v271 = vpack.c.bf16 %v254, %v253
  %v272 = vpack.c.bf16 %v256, %v255
  %v273 = vpack.c.bf16 %v258, %v257
  %v274 = vpack.c.bf16 %v260, %v259
  %v275 = vpack.c.bf16 %v262, %v261
  %v276 = vld [vmem:[%s3] sm:$0xf]
  %v277 = vld [vmem:[%s3 + $0x4] sm:$0xf]
  %v278 = vld [vmem:[%s3 + $0x8] sm:$0xf]
  %v279 = vld [vmem:[%s3 + $0xc] sm:$0xf]
  %v280 = vld [vmem:[%s3 + $0x10] sm:$0xf]
  %v281 = vld [vmem:[%s3 + $0x14] sm:$0xf]
  %v282 = vld [vmem:[%s3 + $0x18] sm:$0xf]
  %v283 = vld [vmem:[%s3 + $0x1c] sm:$0xf]
  %v284 = vld [vmem:[%s3 + $0x20] sm:$0xf]
  %v285 = vld [vmem:[%s3 + $0x24] sm:$0xf]
  %v286 = vld [vmem:[%s3 + $0x28] sm:$0xf]
  %v287 = vld [vmem:[%s3 + $0x2c] sm:$0xf]
  %v288 = vld [vmem:[%s3 + $0x30] sm:$0xf]
  %v289 = vld [vmem:[%s3 + $0x34] sm:$0xf]
  %v290 = vld [vmem:[%s3 + $0x38] sm:$0xf]
  %v291 = vld [vmem:[%s3 + $0x3c] sm:$0xf]
  %v292 = vld [vmem:[%s4] sm:$0x1]
  %v294 = vperm.slane %v292, 0
  %v312 = vunpack.c.l.b16 %v276
  %v313 = vunpack.c.l.b16 %v277
  %v314 = vunpack.c.l.b16 %v278
  %v315 = vunpack.c.l.b16 %v279
  %v316 = vunpack.c.l.b16 %v280
  %v317 = vunpack.c.l.b16 %v281
  %v318 = vunpack.c.l.b16 %v282
  %v319 = vunpack.c.l.b16 %v283
  %v320 = vunpack.c.l.b16 %v284
  %v321 = vunpack.c.l.b16 %v285
  %v322 = vunpack.c.l.b16 %v286
  %v323 = vunpack.c.l.b16 %v287
  %v324 = vunpack.c.l.b16 %v288
  %v325 = vunpack.c.l.b16 %v289
  %v326 = vunpack.c.l.b16 %v290
  %v327 = vunpack.c.l.b16 %v291
  %v328 = vpack.c.b16 %v313, %v312
  %v329 = vpack.c.b16 %v315, %v314
  %v330 = vpack.c.b16 %v317, %v316
  %v331 = vpack.c.b16 %v319, %v318
  %v332 = vpack.c.b16 %v321, %v320
  %v333 = vpack.c.b16 %v323, %v322
  %v334 = vpack.c.b16 %v325, %v324
  %v335 = vpack.c.b16 %v327, %v326
  %344 = vmatpush.bf16.msra.mxu0 %v335
  %345 = vmatpush.bf16.msra.mxu0 %v334
  %346 = vmatpush.bf16.msra.mxu0 %v333
  %347 = vmatpush.bf16.msra.mxu0 %v332
  %348 = vmatpush.bf16.msra.mxu0 %v331
  %349 = vmatpush.bf16.msra.mxu0 %v330
  %350 = vmatpush.bf16.msra.mxu0 %v329
  %351 = vmatpush.bf16.msra.mxu0 %v328
  %352 = vmatmul.bf16.gmra.mxu0 %v263
  %v353 = vpop.f32.mrf.mxu0
  %v354 = vadd.f32 %v294, %v353
  %v355 = vpop.f32.mrf.mxu0
  %v356 = vadd.f32 %v294, %v355
  %357 = vmatmul.bf16.gmra.mxu0 %v264
  %v358 = vpop.f32.mrf.mxu0
  %v359 = vadd.f32 %v294, %v358
  %v360 = vpop.f32.mrf.mxu0
  %v361 = vadd.f32 %v294, %v360
  %362 = vmatmul.bf16.gmra.mxu0 %v265
  %v363 = vpop.f32.mrf.mxu0
  %v364 = vadd.f32 %v294, %v363
  %v365 = vpop.f32.mrf.mxu0
  %v366 = vadd.f32 %v294, %v365
  %367 = vmatmul.bf16.gmra.mxu0 %v266
  %v368 = vpop.f32.mrf.mxu0
  %v369 = vadd.f32 %v294, %v368
  %v370 = vpop.f32.mrf.mxu0
  %v371 = vadd.f32 %v294, %v370
  %372 = vmatmul.bf16.gmra.mxu0 %v267
  %v373 = vpop.f32.mrf.mxu0
  %v374 = vadd.f32 %v294, %v373
  %v375 = vpop.f32.mrf.mxu0
  %v376 = vadd.f32 %v294, %v375
  %377 = vmatmul.bf16.gmra.mxu0 %v268
  %v378 = vpop.f32.mrf.mxu0
  %v379 = vadd.f32 %v294, %v378
  %v380 = vpop.f32.mrf.mxu0
  %v381 = vadd.f32 %v294, %v380
  %382 = vmatmul.bf16.gmra.mxu0 %v269
  %v383 = vpop.f32.mrf.mxu0
  %v384 = vadd.f32 %v294, %v383
  %v385 = vpop.f32.mrf.mxu0
  %v386 = vadd.f32 %v294, %v385
  %387 = vmatmul.bf16.gmra.mxu0 %v270
  %v388 = vpop.f32.mrf.mxu0
  %v389 = vadd.f32 %v294, %v388
  %v390 = vpop.f32.mrf.mxu0
  %v391 = vadd.f32 %v294, %v390
  %392 = vmatmul.bf16.gmra.mxu0 %v271
  %v393 = vpop.f32.mrf.mxu0
  %v394 = vadd.f32 %v294, %v393
  %v395 = vpop.f32.mrf.mxu0
  %v396 = vadd.f32 %v294, %v395
  %397 = vmatmul.bf16.gmra.mxu0 %v272
  %v398 = vpop.f32.mrf.mxu0
  %v399 = vadd.f32 %v294, %v398
  %v400 = vpop.f32.mrf.mxu0
  %v401 = vadd.f32 %v294, %v400
  %402 = vmatmul.bf16.gmra.mxu0 %v273
  %v403 = vpop.f32.mrf.mxu0
  %v404 = vadd.f32 %v294, %v403
  %v405 = vpop.f32.mrf.mxu0
  %v406 = vadd.f32 %v294, %v405
  %407 = vmatmul.bf16.gmra.mxu0 %v274
  %v408 = vpop.f32.mrf.mxu0
  %v409 = vadd.f32 %v294, %v408
  %v410 = vpop.f32.mrf.mxu0
  %v411 = vadd.f32 %v294, %v410
  %412 = vmatmul.bf16.gmra.mxu0 %v275
  %v413 = vpop.f32.mrf.mxu0
  %v414 = vadd.f32 %v294, %v413
  %v415 = vpop.f32.mrf.mxu0
  %v416 = vadd.f32 %v294, %v415
  %417 = vdwg.mxu0
  %v418 = vmax.f32 %v354, 0.0
  %v419 = vmax.f32 %v356, 0.0
  %v420 = vmax.f32 %v359, 0.0
  %v421 = vmax.f32 %v361, 0.0
  %v422 = vmax.f32 %v364, 0.0
  %v423 = vmax.f32 %v366, 0.0
  %v424 = vmax.f32 %v369, 0.0
  %v425 = vmax.f32 %v371, 0.0
  %v426 = vmax.f32 %v374, 0.0
  %v427 = vmax.f32 %v376, 0.0
  %v428 = vmax.f32 %v379, 0.0
  %v429 = vmax.f32 %v381, 0.0
  %v430 = vmax.f32 %v384, 0.0
  %v431 = vmax.f32 %v386, 0.0
  %v432 = vmax.f32 %v389, 0.0
  %v433 = vmax.f32 %v391, 0.0
  %v434 = vmax.f32 %v394, 0.0
  %v435 = vmax.f32 %v396, 0.0
  %v436 = vmax.f32 %v399, 0.0
  %v437 = vmax.f32 %v401, 0.0
  %v438 = vmax.f32 %v404, 0.0
  %v439 = vmax.f32 %v406, 0.0
  %v440 = vmax.f32 %v409, 0.0
  %v441 = vmax.f32 %v411, 0.0
  %v442 = vmax.f32 %v414, 0.0
  %v443 = vmax.f32 %v416, 0.0
  %v444 = vpack.c.bf16 %v419, %v418
  %v445 = vpack.c.bf16 %v421, %v420
  %v446 = vpack.c.bf16 %v423, %v422
  %v447 = vpack.c.bf16 %v425, %v424
  %v448 = vpack.c.bf16 %v427, %v426
  %v449 = vpack.c.bf16 %v429, %v428
  %v450 = vpack.c.bf16 %v431, %v430
  %v451 = vpack.c.bf16 %v433, %v432
  %v452 = vpack.c.bf16 %v435, %v434
  %v453 = vpack.c.bf16 %v437, %v436
  %v454 = vpack.c.bf16 %v439, %v438
  %v455 = vpack.c.bf16 %v441, %v440
  %v456 = vpack.c.bf16 %v443, %v442
  %v457 = vld [vmem:[%s5] sm:$0xf]
  %v458 = vld [vmem:[%s5 + $0x4] sm:$0xf]
  %v459 = vld [vmem:[%s5 + $0x8] sm:$0xf]
  %v460 = vld [vmem:[%s5 + $0xc] sm:$0xf]
  %v461 = vld [vmem:[%s5 + $0x10] sm:$0xf]
  %v462 = vld [vmem:[%s5 + $0x14] sm:$0xf]
  %v463 = vld [vmem:[%s5 + $0x18] sm:$0xf]
  %v464 = vld [vmem:[%s5 + $0x1c] sm:$0xf]
  %v465 = vld [vmem:[%s5 + $0x20] sm:$0xf]
  %v466 = vld [vmem:[%s5 + $0x24] sm:$0xf]
  %v467 = vld [vmem:[%s5 + $0x28] sm:$0xf]
  %v468 = vld [vmem:[%s5 + $0x2c] sm:$0xf]
  %v469 = vld [vmem:[%s5 + $0x30] sm:$0xf]
  %v470 = vld [vmem:[%s5 + $0x34] sm:$0xf]
  %v471 = vld [vmem:[%s5 + $0x38] sm:$0xf]
  %v472 = vld [vmem:[%s5 + $0x3c] sm:$0xf]
  %v473 = vld [vmem:[%s6] sm:$0x1]
  %v475 = vperm.slane %v473, 0
  %v493 = vunpack.c.l.b16 %v457
  %v494 = vunpack.c.l.b16 %v458
  %v495 = vunpack.c.l.b16 %v459
  %v496 = vunpack.c.l.b16 %v460
  %v497 = vunpack.c.l.b16 %v461
  %v498 = vunpack.c.l.b16 %v462
  %v499 = vunpack.c.l.b16 %v463
  %v500 = vunpack.c.l.b16 %v464
  %v501 = vunpack.c.l.b16 %v465
  %v502 = vunpack.c.l.b16 %v466
  %v503 = vunpack.c.l.b16 %v467
  %v504 = vunpack.c.l.b16 %v468
  %v505 = vunpack.c.l.b16 %v469
  %v506 = vunpack.c.l.b16 %v470
  %v507 = vunpack.c.l.b16 %v471
  %v508 = vunpack.c.l.b16 %v472
  %v509 = vpack.c.b16 %v494, %v493
  %v510 = vpack.c.b16 %v496, %v495
  %v511 = vpack.c.b16 %v498, %v497
  %v512 = vpack.c.b16 %v500, %v499
  %v513 = vpack.c.b16 %v502, %v501
  %v514 = vpack.c.b16 %v504, %v503
  %v515 = vpack.c.b16 %v506, %v505
  %v516 = vpack.c.b16 %v508, %v507
  %525 = vmatpush.bf16.msra.mxu0 %v516
  %526 = vmatpush.bf16.msra.mxu0 %v515
  %527 = vmatpush.bf16.msra.mxu0 %v514
  %528 = vmatpush.bf16.msra.mxu0 %v513
  %529 = vmatpush.bf16.msra.mxu0 %v512
  %530 = vmatpush.bf16.msra.mxu0 %v511
  %531 = vmatpush.bf16.msra.mxu0 %v510
  %532 = vmatpush.bf16.msra.mxu0 %v509
  %533 = vmatmul.bf16.gmra.mxu0 %v444
  %v534 = vpop.f32.mrf.mxu0
  %v535 = vadd.f32 %v475, %v534
  %v536 = vpop.f32.mrf.mxu0
  %v537 = vadd.f32 %v475, %v536
  %538 = vmatmul.bf16.gmra.mxu0 %v445
  %v539 = vpop.f32.mrf.mxu0
  %v540 = vadd.f32 %v475, %v539
  %v541 = vpop.f32.mrf.mxu0
  %v542 = vadd.f32 %v475, %v541
  %543 = vmatmul.bf16.gmra.mxu0 %v446
  %v544 = vpop.f32.mrf.mxu0
  %v545 = vadd.f32 %v475, %v544
  %v546 = vpop.f32.mrf.mxu0
  %v547 = vadd.f32 %v475, %v546
  %548 = vmatmul.bf16.gmra.mxu0 %v447
  %v549 = vpop.f32.mrf.mxu0
  %v550 = vadd.f32 %v475, %v549
  %v551 = vpop.f32.mrf.mxu0
  %v552 = vadd.f32 %v475, %v551
  %553 = vmatmul.bf16.gmra.mxu0 %v448
  %v554 = vpop.f32.mrf.mxu0
  %v555 = vadd.f32 %v475, %v554
  %v556 = vpop.f32.mrf.mxu0
  %v557 = vadd.f32 %v475, %v556
  %558 = vmatmul.bf16.gmra.mxu0 %v449
  %v559 = vpop.f32.mrf.mxu0
  %v560 = vadd.f32 %v475, %v559
  %v561 = vpop.f32.mrf.mxu0
  %v562 = vadd.f32 %v475, %v561
  %563 = vmatmul.bf16.gmra.mxu0 %v450
  %v564 = vpop.f32.mrf.mxu0
  %v565 = vadd.f32 %v475, %v564
  %v566 = vpop.f32.mrf.mxu0
  %v567 = vadd.f32 %v475, %v566
  %568 = vmatmul.bf16.gmra.mxu0 %v451
  %v569 = vpop.f32.mrf.mxu0
  %v570 = vadd.f32 %v475, %v569
  %v571 = vpop.f32.mrf.mxu0
  %v572 = vadd.f32 %v475, %v571
  %573 = vmatmul.bf16.gmra.mxu0 %v452
  %v574 = vpop.f32.mrf.mxu0
  %v575 = vadd.f32 %v475, %v574
  %v576 = vpop.f32.mrf.mxu0
  %v577 = vadd.f32 %v475, %v576
  %578 = vmatmul.bf16.gmra.mxu0 %v453
  %v579 = vpop.f32.mrf.mxu0
  %v580 = vadd.f32 %v475, %v579
  %v581 = vpop.f32.mrf.mxu0
  %v582 = vadd.f32 %v475, %v581
  %583 = vmatmul.bf16.gmra.mxu0 %v454
  %v584 = vpop.f32.mrf.mxu0
  %v585 = vadd.f32 %v475, %v584
  %v586 = vpop.f32.mrf.mxu0
  %v587 = vadd.f32 %v475, %v586
  %588 = vmatmul.bf16.gmra.mxu0 %v455
  %v589 = vpop.f32.mrf.mxu0
  %v590 = vadd.f32 %v475, %v589
  %v591 = vpop.f32.mrf.mxu0
  %v592 = vadd.f32 %v475, %v591
  %593 = vmatmul.bf16.gmra.mxu0 %v456
  %v594 = vpop.f32.mrf.mxu0
  %v595 = vadd.f32 %v475, %v594
  %v596 = vpop.f32.mrf.mxu0
  %v597 = vadd.f32 %v475, %v596
  %598 = vdwg.mxu0
  %v599 = vpack.c.bf16 %v535, %v535
  %v600 = vpack.c.bf16 %v537, %v537
  %v601 = vpack.c.bf16 %v540, %v540
  %v602 = vpack.c.bf16 %v542, %v542
  %v603 = vpack.c.bf16 %v545, %v545
  %v604 = vpack.c.bf16 %v547, %v547
  %v605 = vpack.c.bf16 %v550, %v550
  %v606 = vpack.c.bf16 %v552, %v552
  %v607 = vpack.c.bf16 %v555, %v555
  %v608 = vpack.c.bf16 %v557, %v557
  %v609 = vpack.c.bf16 %v560, %v560
  %v610 = vpack.c.bf16 %v562, %v562
  %v611 = vpack.c.bf16 %v565, %v565
  %v612 = vpack.c.bf16 %v567, %v567
  %v613 = vpack.c.bf16 %v570, %v570
  %v614 = vpack.c.bf16 %v572, %v572
  %v615 = vpack.c.bf16 %v575, %v575
  %v616 = vpack.c.bf16 %v577, %v577
  %v617 = vpack.c.bf16 %v580, %v580
  %v618 = vpack.c.bf16 %v582, %v582
  %v619 = vpack.c.bf16 %v585, %v585
  %v620 = vpack.c.bf16 %v587, %v587
  %v621 = vpack.c.bf16 %v590, %v590
  %v622 = vpack.c.bf16 %v592, %v592
  %v623 = vpack.c.bf16 %v595, %v595
  %v624 = vpack.c.bf16 %v597, %v597
  %625 = vst [vmem:[%s7] sm:$0xf] %v599
  %626 = vst [vmem:[%s7 + $0x4] sm:$0xf] %v600
  %627 = vst [vmem:[%s7 + $0x8] sm:$0xf] %v601
  %628 = vst [vmem:[%s7 + $0xc] sm:$0xf] %v602
  %629 = vst [vmem:[%s7 + $0x10] sm:$0xf] %v603
  %630 = vst [vmem:[%s7 + $0x14] sm:$0xf] %v604
  %631 = vst [vmem:[%s7 + $0x18] sm:$0xf] %v605
  %632 = vst [vmem:[%s7 + $0x1c] sm:$0xf] %v606
  %633 = vst [vmem:[%s7 + $0x20] sm:$0xf] %v607
  %634 = vst [vmem:[%s7 + $0x24] sm:$0xf] %v608
  %635 = vst [vmem:[%s7 + $0x28] sm:$0xf] %v609
  %636 = vst [vmem:[%s7 + $0x2c] sm:$0xf] %v610
  %637 = vst [vmem:[%s7 + $0x30] sm:$0xf] %v611
  %638 = vst [vmem:[%s7 + $0x34] sm:$0xf] %v612
  %639 = vst [vmem:[%s7 + $0x38] sm:$0xf] %v613
  %640 = vst [vmem:[%s7 + $0x3c] sm:$0xf] %v614
  %641 = vst [vmem:[%s7 + $0x40] sm:$0xf] %v615
  %642 = vst [vmem:[%s7 + $0x44] sm:$0xf] %v616
  %643 = vst [vmem:[%s7 + $0x48] sm:$0xf] %v617
  %644 = vst [vmem:[%s7 + $0x4c] sm:$0xf] %v618
  %645 = vst [vmem:[%s7 + $0x50] sm:$0xf] %v619
  %646 = vst [vmem:[%s7 + $0x54] sm:$0xf] %v620
  %647 = vst [vmem:[%s7 + $0x58] sm:$0xf] %v621
  %648 = vst [vmem:[%s7 + $0x5c] sm:$0xf] %v622
  %649 = vst [vmem:[%s7 + $0x60] sm:$0xf] %v623
  %650 = vst [vmem:[%s7 + $0x64] sm:$0xf] %v624
  // Predicated region
  $region30: #{actor_critic_forward.1} parent=0 // pred_check
    _
  $region31: #{actor_critic_forward.1} parent=0 // pred_check_branch
    %652 = sbr.rel (0) target = $region33
  $region32: #{actor_critic_forward.1} parent=0 // pred_region
    _
  $region33: #{actor_critic_forward.1} parent=0 // pred_fallthru
    _
  // Predicated region
  $region34: #{actor_critic_forward.1} parent=0 // pred_check
    _
  $region35: #{actor_critic_forward.1} parent=0 // pred_check_branch
    %654 = sbr.rel (0) target = $region37
  $region36: #{actor_critic_forward.1} parent=0 // pred_region
    _
  $region37: #{actor_critic_forward.1} parent=0 // pred_fallthru
    _

</llo_original>
